<compile_context>
chip_gen: v7x
topology: tpu7x:2x2x1
jax: 0.10.0
libtpu: 0.0.40
codegen_flags: <defaults>
</compile_context>

<pallas_src>
import math

import jax
import jax.numpy as jnp
from jax.experimental import pallas as pl
from jax.experimental.pallas import tpu as pltpu  # noqa: F401  (TPU backend)

# ---- module hyperparameters (small, consistent with the module) ----
D_MODEL = 32
SEQ = 8
BATCH = 2
MAX_SEQ_LEN = 1000
DROPOUT_PROB = 0.1  # identity in eval mode


def pos_encoding_add_kernel(x_ref, pe_ref, out_ref):
    # x_ref, pe_ref, out_ref: (B, S*D) lane-dense views. Single f32 VPU add.
    out_ref[...] = x_ref[...] + pe_ref[...]


def make_pos_encoding_table(d_model: int, max_seq_len: int) -> jnp.ndarray:
    """Matches the PyTorch buffer: pe[:, 0::2]=sin(pos*div), pe[:, 1::2]=cos(pos*div)."""
    position = jnp.arange(0, max_seq_len, dtype=jnp.float32)[:, None]         # (L, 1)
    div_term = jnp.exp(
        jnp.arange(0, d_model, 2, dtype=jnp.float32) * (-(math.log(10000.0) / d_model))
    )                                                                          # (D/2,)
    angles = position * div_term                                               # (L, D/2)
    pe = jnp.zeros((max_seq_len, d_model), dtype=jnp.float32)
    pe = pe.at[:, 0::2].set(jnp.sin(angles))
    pe = pe.at[:, 1::2].set(jnp.cos(angles))
    return pe                                                                  # (L, D)


def prepare_pe_slab(pe_table: jnp.ndarray, batch: int, seq_len: int,
                    dtype=jnp.float32) -> jnp.ndarray:
    """Done once at module-init time (outside the traced call path):
    slice to the sequence length, match x's dtype (free here; matters for bf16 on
    v5e), pre-tile over batch, and flatten to a lane-dense (B, S*D) slab."""
    pe = pe_table[:seq_len, :].astype(dtype)              # (S, D)
    pe_flat = pe.reshape(1, seq_len * pe.shape[-1])       # (1, S*D)
    return jnp.tile(pe_flat, (batch, 1))                  # (B, S*D)


def positional_encoding(x: jnp.ndarray, pe_slab: jnp.ndarray) -> jnp.ndarray:
    """x: (B, S, D); pe_slab: (B, S*D) precomputed constant. Returns x + pe[:S]."""
    B, S, D = x.shape
    x_flat = x.reshape(B, S * D)                          # contiguous -> bitcast

    out_flat = pl.pallas_call(
        pos_encoding_add_kernel,
        out_shape=jax.ShapeDtypeStruct((B, S * D), x.dtype),
        # No grid: single kernel step, full lane-dense arrays resident in VMEM.
        in_specs=[
            pl.BlockSpec((B, S * D), lambda: (0, 0)),
            pl.BlockSpec((B, S * D), lambda: (0, 0)),
        ],
        out_specs=pl.BlockSpec((B, S * D), lambda: (0, 0)),
        # Elementwise add: write in place into x's buffer.
        input_output_aliases={0: 0},
    )(x_flat, pe_slab)

    return out_flat.reshape(B, S, D)


if __name__ == "__main__":
    key = jax.random.PRNGKey(0)
    x = jax.random.normal(key, (BATCH, SEQ, D_MODEL), jnp.float32)

    # "register_buffer" analog: built once, outside the per-call path.
    pe_table = make_pos_encoding_table(D_MODEL, MAX_SEQ_LEN)
    pe_slab = prepare_pe_slab(pe_table, BATCH, SEQ, x.dtype)

    out = positional_encoding(x, pe_slab)
    jax.block_until_ready(out)

    # correctness check against the pure-JAX reference of the PyTorch forward (eval mode)
    ref = x + pe_table[None, :SEQ, :]
    assert out.shape == (BATCH, SEQ, D_MODEL)
    assert jnp.allclose(out, ref, atol=1e-6), "mismatch vs reference"

    print("KERNEL_OK")
</pallas_src>

<mosaic_0001>
module attributes {stable_mosaic.version = 11 : i64} {
  func.func @pos_encoding_add_kernel(%arg0: memref<2x256xf32, #tpu.memory_space<vmem>>, %arg1: memref<2x256xf32, #tpu.memory_space<vmem>>, %arg2: memref<2x256xf32, #tpu.memory_space<vmem>>) attributes {dimension_semantics = [], scalar_prefetch = 0 : i64, scratch_operands = 0 : i64, tpu.core_type = #tpu.core_type<tc>} {
    %c0 = arith.constant 0 : index
    %c0_0 = arith.constant 0 : index
    %0 = vector.load %arg0[%c0, %c0_0] : memref<2x256xf32, #tpu.memory_space<vmem>>, vector<2x256xf32>
    %c0_1 = arith.constant 0 : index
    %c0_2 = arith.constant 0 : index
    %1 = vector.load %arg1[%c0_1, %c0_2] : memref<2x256xf32, #tpu.memory_space<vmem>>, vector<2x256xf32>
    %2 = arith.addf %0, %1 : vector<2x256xf32>
    %c0_3 = arith.constant 0 : index
    %c0_4 = arith.constant 0 : index
    %3 = vector.load %arg2[%c0_3, %c0_4] : memref<2x256xf32, #tpu.memory_space<vmem>>, vector<2x256xf32>
    tpu.vector_store %arg2[%c0_3, %c0_4], %2 {strides = array<i32>} : memref<2x256xf32, #tpu.memory_space<vmem>>, vector<2x256xf32>,
    return
  }
}

</mosaic_0001>

<llo_original>
// kernel: tpu_custom_call.1
$region0: #{tpu_custom_call.1}
  #allocation0 [shape = 'u32[]', space=smem, size = 0x4, offset = 0x4, fixed_abs, tag = 'smem constant byte address 0x4 - core index']
  #allocation1 [shape = 'u32[144,128]{1,0:T(1,128)}', space=vmem, size = 0x12000, scoped, tag = 'internal scratch']
  %s0 = inlined_call_operand.hbm [shape: f32[2,256], index: 0, kind: input, shape index: {}, may-alias: {0,2}]
  %s1 = inlined_call_operand.vmem [shape: f32[2,256], index: 1, kind: input, shape index: {}]
  %s2 = inlined_call_operand.hbm [shape: f32[2,256], index: 2, kind: output, shape index: {}, may-alias: {0,2}]
  %s3 = sld [smem:[#allocation0]]
  $region22: #{tpu_custom_call.1} parent=0
    _
  %s5 = ssub.s32 1, %s3
  %s6 = scalar_select 0, %s5, %s3
  $region1: #{tpu_custom_call.1} parent=0
    #allocation2 [shape = 'u8[2048]{0}', space=vmem, size = 0x800, scoped, tag = 'input window, operand 0, single buffered']
    #allocation3 [shape = 's32[1]{0}', space=sflag, size = 0x4, scoped, tag = 'scoped memory for tpu_custom_call.1']
    #allocation4 [shape = 's32[1]{0}', space=sflag, size = 0x4, scoped, tag = 'scoped memory for tpu_custom_call.1']
    #allocation5 [shape = 'u8[2048]{0}', space=vmem, size = 0x800, scoped, tag = 'output window, operand 0, single buffered']
    %7 = vsyncpa [#allocation3], 0
    %8 = vsyncpa [#allocation4], 0
    // Predicated region
    $region2: #{tpu_custom_call.1} parent=1 // pred_check
      _
    $region3: #{tpu_custom_call.1} parent=1 // pred_check_branch
      %10 = sbr.rel (0) target = $region5
    $region4: #{tpu_custom_call.1} parent=1 // pred_region
      %s12 = ssub.s32 64, 64
      %13 = vsyncadd [#allocation3], %s12
      %s15 = sshll.u32 [#allocation2], 4
      %s16 = int_to_ptr.vmem [resolvable:$true] %s15
      %18 = dma.hbm_to_vmem [thread:$0]  %s0, 64, %s16, [#allocation3]
    $region5: #{tpu_custom_call.1} parent=1 // pred_fallthru
      _
    // Predicated region
    $region6: #{tpu_custom_call.1} parent=1 // pred_check
      _
    $region7: #{tpu_custom_call.1} parent=1 // pred_check_branch
      %20 = sbr.rel (0) target = $region9
    $region8: #{tpu_custom_call.1} parent=1 // pred_region
      _
    $region9: #{tpu_custom_call.1} parent=1 // pred_fallthru
      _
    // Predicated region
    $region10: #{tpu_custom_call.1} parent=1 // pred_check
      _
    $region11: #{tpu_custom_call.1} parent=1 // pred_check_branch
      %22 = sbr.rel (0) target = $region13
    $region12: #{tpu_custom_call.1} parent=1 // pred_region
      %23 = dma.done [#allocation3], 64
    $region13: #{tpu_custom_call.1} parent=1 // pred_fallthru
      _
    %v24 = vld [vmem:[#allocation2] sm:$0xf]
    %v25 = vld [vmem:[%s1] sm:$0xf]
    %v26 = vadd.f32 %v24, %v25
    %27 = vst [vmem:[#allocation5] sm:$0xf] %v26
    // Predicated region
    $region14: #{tpu_custom_call.1} parent=1 // pred_check
      _
    $region15: #{tpu_custom_call.1} parent=1 // pred_check_branch
      %29 = sbr.rel (0) target = $region17
    $region16: #{tpu_custom_call.1} parent=1 // pred_region
      %s31 = ssub.s32 64, 64
      %32 = vsyncadd [#allocation4], %s31
      %s34 = sshll.u32 [#allocation5], 4
      %s35 = int_to_ptr.vmem [resolvable:$true] %s34
      %37 = dma.vmem_to_hbm [thread:$0]  %s35, 64, %s2, [#allocation4]
    $region17: #{tpu_custom_call.1} parent=1 // pred_fallthru
      _
    // Predicated region
    $region18: #{tpu_custom_call.1} parent=1 // pred_check
      _
    $region19: #{tpu_custom_call.1} parent=1 // pred_check_branch
      %39 = sbr.rel (0) target = $region21
    $region20: #{tpu_custom_call.1} parent=1 // pred_region
      %40 = dma.done [#allocation4], 64
    $region21: #{tpu_custom_call.1} parent=1 // pred_fallthru
      _
    %41 = vsyncpa [#allocation3], 1
    %42 = vsyncpa [#allocation4], 1

</llo_original>
